<compile_context>
chip_gen: v7x
topology: tpu7x:2x2x1
jax: 0.10.0
libtpu: 0.0.40
codegen_flags: <defaults>
</compile_context>

<pallas_src>
import functools

import jax
import jax.numpy as jnp
from jax.experimental import pallas as pl
from jax.experimental.pallas import tpu as pltpu

_MAX_TB = 256   # cap on the per-grid-step batch tile (rows), multiple of 8 for f32 sublanes


def _round_up(x, m):
    return ((x + m - 1) // m) * m


def _actor_kernel(s_ref, h_ref, w1s_ref, w1h_ref, b1_ref, w2_ref, b2_ref,
                  w3_ref, b3_ref, out_ref):
    # Linear 1 (split over [states | histories]) + ReLU
    h1 = (jnp.dot(s_ref[...], w1s_ref[...], preferred_element_type=jnp.float32)
          + jnp.dot(h_ref[...], w1h_ref[...], preferred_element_type=jnp.float32)
          + b1_ref[...])
    h1 = jnp.maximum(h1, 0.0)
    # Linear 2 + ReLU
    h2 = jnp.dot(h1, w2_ref[...], preferred_element_type=jnp.float32) + b2_ref[...]
    h2 = jnp.maximum(h2, 0.0)
    # Linear 3 -> logits (exact width = num_actions, no padding, no -inf)
    logits = jnp.dot(h2, w3_ref[...], preferred_element_type=jnp.float32) + b3_ref[...]
    # numerically-stable softmax (exact normalization)
    m = jnp.max(logits, axis=-1, keepdims=True)
    e = jnp.exp(logits - m)
    out_ref[...] = e / jnp.sum(e, axis=-1, keepdims=True)


def controller_daction_forward(states, histories, kernel_params, num_actions):
    """Returns the Categorical `probs` tensor, shape [batch, num_actions]."""
    w1s, w1h, b1, w2, b2, w3, b3 = kernel_params
    states = states.astype(jnp.float32)
    histories = histories.astype(jnp.float32)

    batch, state_dim = states.shape
    history_dim = histories.shape[1]
    hidden = w2.shape[0]

    # Adaptive batch tile: big enough to amortize per-step pipeline overhead and fill the
    # MXU M dimension; capped so large batches still yield a multi-step "parallel" grid
    # (lets v7x shard the batch axis across its two TensorCores).
    tb = min(_round_up(batch, 8), _MAX_TB)
    n_tiles = pl.cdiv(batch, tb)
    b_pad = n_tiles * tb
    if b_pad != batch:
        states = jnp.pad(states, ((0, b_pad - batch), (0, 0)))
        histories = jnp.pad(histories, ((0, b_pad - batch), (0, 0)))

    d_in = state_dim + history_dim
    cost = pl.CostEstimate(
        flops=2 * b_pad * (d_in * hidden + hidden * hidden + hidden * num_actions),
        transcendentals=b_pad * num_actions,
        bytes_accessed=4 * (b_pad * d_in
                            + d_in * hidden + hidden
                            + hidden * hidden + hidden
                            + hidden * num_actions + num_actions
                            + b_pad * num_actions),
    )

    # weights/biases: constant block index -> resident in VMEM across all grid steps
    const = lambda shape: pl.BlockSpec(shape, lambda i: (0, 0))
    probs = pl.pallas_call(
        _actor_kernel,
        out_shape=jax.ShapeDtypeStruct((b_pad, num_actions), jnp.float32),
        grid=(n_tiles,),
        in_specs=[
            pl.BlockSpec((tb, state_dim), lambda i: (i, 0)),
            pl.BlockSpec((tb, history_dim), lambda i: (i, 0)),
            const((state_dim, hidden)),
            const((history_dim, hidden)),
            const((1, hidden)),
            const((hidden, hidden)),
            const((1, hidden)),
            const((hidden, num_actions)),
            const((1, num_actions)),
        ],
        out_specs=pl.BlockSpec((tb, num_actions), lambda i: (i, 0)),
        compiler_params=pltpu.CompilerParams(
            dimension_semantics=("parallel",)),
        cost_estimate=cost,
    )(states, histories, w1s, w1h, b1, w2, b2, w3, b3)

    if b_pad != batch:
        probs = probs[:batch]   # cheap row-only slice; no column slice needed any more
    return probs


def init_params(key, state_dim, history_dim, num_actions, hidden_dim):
    """Deterministic init matching Controller_DAction.actor shapes.

    Weights are stored as (in, out) — the transpose of torch's nn.Linear weight.
    """
    d_in = state_dim + history_dim
    keys = jax.random.split(key, 6)

    def linear(kw, kb, fan_in, fan_out):
        bound = 1.0 / jnp.sqrt(fan_in)
        w = jax.random.uniform(kw, (fan_in, fan_out), jnp.float32, -bound, bound)
        b = jax.random.uniform(kb, (fan_out,), jnp.float32, -bound, bound)
        return w, b

    w1, b1 = linear(keys[0], keys[1], d_in, hidden_dim)
    w2, b2 = linear(keys[2], keys[3], hidden_dim, hidden_dim)
    w3, b3 = linear(keys[4], keys[5], hidden_dim, num_actions)
    return (w1, b1, w2, b2, w3, b3)


def prepare_kernel_params(params, state_dim):
    """One-time layout prep: split W1 over [states|histories]; 2-D biases for broadcast."""
    w1, b1, w2, b2, w3, b3 = params
    w1s = w1[:state_dim, :]
    w1h = w1[state_dim:, :]
    return (w1s, w1h, b1.reshape(1, -1), w2, b2.reshape(1, -1),
            w3, b3.reshape(1, -1))


def _reference_forward(states, histories, params):
    """Pure-JAX reference of the torch forward (actor path)."""
    x = jnp.concatenate([states, histories], axis=1)
    w1, b1, w2, b2, w3, b3 = params
    h = jnp.maximum(x @ w1 + b1, 0.0)
    h = jnp.maximum(h @ w2 + b2, 0.0)
    logits = h @ w3 + b3
    return jax.nn.softmax(logits, axis=-1)


if __name__ == "__main__":
    state_dim = 4
    history_dim = 4
    num_actions = 8
    hidden_dim = 32

    key = jax.random.PRNGKey(0)
    k_params, _ = jax.random.split(key)

    params = init_params(k_params, state_dim, history_dim, num_actions, hidden_dim)
    kparams = prepare_kernel_params(params, state_dim)

    fwd = functools.partial(controller_daction_forward,
                            kernel_params=kparams, num_actions=num_actions)

    ok = True
    # batch=2  : single tile with row padding
    # batch=64 : single exact tile
    # batch=300: multi-step grid (2 tiles of 256) with a partially padded last tile
    for batch in (2, 64, 300):
        ks, kh = jax.random.split(jax.random.fold_in(key, batch))
        states = jax.random.normal(ks, (batch, state_dim), jnp.float32)
        histories = jax.random.normal(kh, (batch, history_dim), jnp.float32)

        probs = fwd(states, histories)
        probs = jax.block_until_ready(probs)
        ref = _reference_forward(states, histories, params)

        ok &= probs.shape == (batch, num_actions)
        # tolerance covers possible MXU vs XLA matmul-precision differences (f32 passes)
        ok &= bool(jnp.allclose(probs, ref, atol=2e-3, rtol=2e-3))
        ok &= bool(jnp.allclose(jnp.sum(probs, axis=-1), 1.0, atol=1e-4))

    # TODO(synk): get_values / loss_fn (value head + REINFORCE loss) are not part of
    # forward(); only the actor path is implemented as a Pallas kernel.
    assert ok
    print("KERNEL_OK")
</pallas_src>

<mosaic_0001>
module attributes {stable_mosaic.version = 11 : i64} {
  func.func @_actor_kernel(%arg0: i32, %arg1: memref<8x4xf32, #tpu.memory_space<vmem>>, %arg2: memref<8x4xf32, #tpu.memory_space<vmem>>, %arg3: memref<4x32xf32, #tpu.memory_space<vmem>>, %arg4: memref<4x32xf32, #tpu.memory_space<vmem>>, %arg5: memref<1x32xf32, #tpu.memory_space<vmem>>, %arg6: memref<32x32xf32, #tpu.memory_space<vmem>>, %arg7: memref<1x32xf32, #tpu.memory_space<vmem>>, %arg8: memref<32x8xf32, #tpu.memory_space<vmem>>, %arg9: memref<1x8xf32, #tpu.memory_space<vmem>>, %arg10: memref<8x8xf32, #tpu.memory_space<vmem>>) attributes {dimension_semantics = [#tpu.dimension_semantics<parallel>], iteration_bounds = array<i64: 1>, scalar_prefetch = 0 : i64, scratch_operands = 0 : i64, tpu.core_type = #tpu.core_type<tc>, window_params = [{transform_indices = @transform_0, window_bounds = array<i64: 8, 4>}, {transform_indices = @transform_1, window_bounds = array<i64: 8, 4>}, {pipeline_mode = #tpu.pipeline_mode<synchronous>, transform_indices = @transform_2, window_bounds = array<i64: 4, 32>}, {pipeline_mode = #tpu.pipeline_mode<synchronous>, transform_indices = @transform_3, window_bounds = array<i64: 4, 32>}, {pipeline_mode = #tpu.pipeline_mode<synchronous>, transform_indices = @transform_4, window_bounds = array<i64: 1, 32>}, {pipeline_mode = #tpu.pipeline_mode<synchronous>, transform_indices = @transform_5, window_bounds = array<i64: 32, 32>}, {pipeline_mode = #tpu.pipeline_mode<synchronous>, transform_indices = @transform_6, window_bounds = array<i64: 1, 32>}, {pipeline_mode = #tpu.pipeline_mode<synchronous>, transform_indices = @transform_7, window_bounds = array<i64: 32, 8>}, {pipeline_mode = #tpu.pipeline_mode<synchronous>, transform_indices = @transform_8, window_bounds = array<i64: 1, 8>}, {transform_indices = @transform_9, window_bounds = array<i64: 8, 8>}]} {
    %c0 = arith.constant 0 : index
    %c0_0 = arith.constant 0 : index
    %0 = vector.load %arg1[%c0, %c0_0] : memref<8x4xf32, #tpu.memory_space<vmem>>, vector<8x4xf32>
    %c0_1 = arith.constant 0 : index
    %c0_2 = arith.constant 0 : index
    %1 = vector.load %arg3[%c0_1, %c0_2] : memref<4x32xf32, #tpu.memory_space<vmem>>, vector<4x32xf32>
    %cst = arith.constant dense<0.000000e+00> : vector<8x32xf32>
    %2 = tpu.matmul %0, %1, %cst {dimension_numbers = #tpu.dot_dimension_numbers<[1], [0], [0], [1], [0, 0, 1, 1], [], []>} : vector<8x4xf32>, vector<4x32xf32>, vector<8x32xf32> -> vector<8x32xf32>
    %c0_3 = arith.constant 0 : index
    %c0_4 = arith.constant 0 : index
    %3 = vector.load %arg2[%c0_3, %c0_4] : memref<8x4xf32, #tpu.memory_space<vmem>>, vector<8x4xf32>
    %c0_5 = arith.constant 0 : index
    %c0_6 = arith.constant 0 : index
    %4 = vector.load %arg4[%c0_5, %c0_6] : memref<4x32xf32, #tpu.memory_space<vmem>>, vector<4x32xf32>
    %cst_7 = arith.constant dense<0.000000e+00> : vector<8x32xf32>
    %5 = tpu.matmul %3, %4, %cst_7 {dimension_numbers = #tpu.dot_dimension_numbers<[1], [0], [0], [1], [0, 0, 1, 1], [], []>} : vector<8x4xf32>, vector<4x32xf32>, vector<8x32xf32> -> vector<8x32xf32>
    %6 = arith.addf %2, %5 : vector<8x32xf32>
    %c0_8 = arith.constant 0 : index
    %c0_9 = arith.constant 0 : index
    %7 = vector.load %arg5[%c0_8, %c0_9] : memref<1x32xf32, #tpu.memory_space<vmem>>, vector<1x32xf32>
    %8 = vector.broadcast %7 : vector<1x32xf32> to vector<8x32xf32>
    %9 = arith.addf %6, %8 : vector<8x32xf32>
    %cst_10 = arith.constant 0.000000e+00 : f32
    %10 = vector.broadcast %cst_10 : f32 to vector<8x32xf32>
    %11 = arith.maximumf %9, %10 : vector<8x32xf32>
    %c0_11 = arith.constant 0 : index
    %c0_12 = arith.constant 0 : index
    %12 = vector.load %arg6[%c0_11, %c0_12] : memref<32x32xf32, #tpu.memory_space<vmem>>, vector<32x32xf32>
    %cst_13 = arith.constant dense<0.000000e+00> : vector<8x32xf32>
    %13 = tpu.matmul %11, %12, %cst_13 {dimension_numbers = #tpu.dot_dimension_numbers<[1], [0], [0], [1], [0, 0, 1, 1], [], []>} : vector<8x32xf32>, vector<32x32xf32>, vector<8x32xf32> -> vector<8x32xf32>
    %c0_14 = arith.constant 0 : index
    %c0_15 = arith.constant 0 : index
    %14 = vector.load %arg7[%c0_14, %c0_15] : memref<1x32xf32, #tpu.memory_space<vmem>>, vector<1x32xf32>
    %15 = vector.broadcast %14 : vector<1x32xf32> to vector<8x32xf32>
    %16 = arith.addf %13, %15 : vector<8x32xf32>
    %cst_16 = arith.constant 0.000000e+00 : f32
    %17 = vector.broadcast %cst_16 : f32 to vector<8x32xf32>
    %18 = arith.maximumf %16, %17 : vector<8x32xf32>
    %c0_17 = arith.constant 0 : index
    %c0_18 = arith.constant 0 : index
    %19 = vector.load %arg8[%c0_17, %c0_18] : memref<32x8xf32, #tpu.memory_space<vmem>>, vector<32x8xf32>
    %cst_19 = arith.constant dense<0.000000e+00> : vector<8x8xf32>
    %20 = tpu.matmul %18, %19, %cst_19 {dimension_numbers = #tpu.dot_dimension_numbers<[1], [0], [0], [1], [0, 0, 1, 1], [], []>} : vector<8x32xf32>, vector<32x8xf32>, vector<8x8xf32> -> vector<8x8xf32>
    %c0_20 = arith.constant 0 : index
    %c0_21 = arith.constant 0 : index
    %21 = vector.load %arg9[%c0_20, %c0_21] : memref<1x8xf32, #tpu.memory_space<vmem>>, vector<1x8xf32>
    %22 = vector.broadcast %21 : vector<1x8xf32> to vector<8x8xf32>
    %23 = arith.addf %20, %22 : vector<8x8xf32>
    %cst_22 = arith.constant dense<0xFF800000> : vector<8xf32>
    %24 = vector.multi_reduction <maximumf>, %23, %cst_22 [1] : vector<8x8xf32> to vector<8xf32>
    %25 = vector.shape_cast %24 : vector<8xf32> to vector<8x1xf32>
    %26 = vector.broadcast %25 : vector<8x1xf32> to vector<8x8xf32>
    %27 = arith.subf %23, %26 : vector<8x8xf32>
    %28 = math.exp %27 : vector<8x8xf32>
    %cst_23 = arith.constant dense<0.000000e+00> : vector<8xf32>
    %29 = vector.multi_reduction <add>, %28, %cst_23 [1] : vector<8x8xf32> to vector<8xf32>
    %30 = vector.shape_cast %29 : vector<8xf32> to vector<8x1xf32>
    %31 = vector.broadcast %30 : vector<8x1xf32> to vector<8x8xf32>
    %32 = arith.divf %28, %31 : vector<8x8xf32>
    %c0_24 = arith.constant 0 : index
    %c0_25 = arith.constant 0 : index
    %33 = vector.load %arg10[%c0_24, %c0_25] : memref<8x8xf32, #tpu.memory_space<vmem>>, vector<8x8xf32>
    tpu.vector_store %arg10[%c0_24, %c0_25], %32 {strides = array<i32>} : memref<8x8xf32, #tpu.memory_space<vmem>>, vector<8x8xf32>,
    return
  }
  func.func @transform_0(%arg0: i32) -> (i32, i32) {
    %c0_i32 = arith.constant 0 : i32
    %c0_i32_0 = arith.constant 0 : i32
    return %arg0, %c0_i32 : i32, i32
  }
  func.func @transform_1(%arg0: i32) -> (i32, i32) {
    %c0_i32 = arith.constant 0 : i32
    %c0_i32_0 = arith.constant 0 : i32
    return %arg0, %c0_i32 : i32, i32
  }
  func.func @transform_2(%arg0: i32) -> (i32, i32) {
    %c0_i32 = arith.constant 0 : i32
    %c0_i32_0 = arith.constant 0 : i32
    %c0_i32_1 = arith.constant 0 : i32
    return %c0_i32, %c0_i32_0 : i32, i32
  }
  func.func @transform_3(%arg0: i32) -> (i32, i32) {
    %c0_i32 = arith.constant 0 : i32
    %c0_i32_0 = arith.constant 0 : i32
    %c0_i32_1 = arith.constant 0 : i32
    return %c0_i32, %c0_i32_0 : i32, i32
  }
  func.func @transform_4(%arg0: i32) -> (i32, i32) {
    %c0_i32 = arith.constant 0 : i32
    %c0_i32_0 = arith.constant 0 : i32
    %c0_i32_1 = arith.constant 0 : i32
    return %c0_i32, %c0_i32_0 : i32, i32
  }
  func.func @transform_5(%arg0: i32) -> (i32, i32) {
    %c0_i32 = arith.constant 0 : i32
    %c0_i32_0 = arith.constant 0 : i32
    %c0_i32_1 = arith.constant 0 : i32
    return %c0_i32, %c0_i32_0 : i32, i32
  }
  func.func @transform_6(%arg0: i32) -> (i32, i32) {
    %c0_i32 = arith.constant 0 : i32
    %c0_i32_0 = arith.constant 0 : i32
    %c0_i32_1 = arith.constant 0 : i32
    return %c0_i32, %c0_i32_0 : i32, i32
  }
  func.func @transform_7(%arg0: i32) -> (i32, i32) {
    %c0_i32 = arith.constant 0 : i32
    %c0_i32_0 = arith.constant 0 : i32
    %c0_i32_1 = arith.constant 0 : i32
    return %c0_i32, %c0_i32_0 : i32, i32
  }
  func.func @transform_8(%arg0: i32) -> (i32, i32) {
    %c0_i32 = arith.constant 0 : i32
    %c0_i32_0 = arith.constant 0 : i32
    %c0_i32_1 = arith.constant 0 : i32
    return %c0_i32, %c0_i32_0 : i32, i32
  }
  func.func @transform_9(%arg0: i32) -> (i32, i32) {
    %c0_i32 = arith.constant 0 : i32
    %c0_i32_0 = arith.constant 0 : i32
    return %arg0, %c0_i32 : i32, i32
  }
}

</mosaic_0001>

<llo_original>
// kernel: tpu_custom_call.1
$region0: #{tpu_custom_call.1}
  #allocation0 [shape = 'u32[]', space=smem, size = 0x4, offset = 0x4, fixed_abs, tag = 'smem constant byte address 0x4 - core index']
  #allocation1 [shape = 'u32[144,128]{1,0:T(1,128)}', space=vmem, size = 0x12000, scoped, tag = 'internal scratch']
  %s0 = inlined_call_operand.vmem [shape: f32[8,4], index: 0, kind: input, shape index: {}]
  %s1 = inlined_call_operand.vmem [shape: f32[8,4], index: 1, kind: input, shape index: {}]
  %s2 = inlined_call_operand.vmem [shape: f32[4,32], index: 2, kind: input, shape index: {}]
  %s3 = inlined_call_operand.vmem [shape: f32[4,32], index: 3, kind: input, shape index: {}]
  %s4 = inlined_call_operand.vmem [shape: f32[1,32], index: 4, kind: input, shape index: {}]
  %s5 = inlined_call_operand.vmem [shape: f32[32,32], index: 5, kind: input, shape index: {}]
  %s6 = inlined_call_operand.vmem [shape: f32[1,32], index: 6, kind: input, shape index: {}]
  %s7 = inlined_call_operand.vmem [shape: f32[32,8], index: 7, kind: input, shape index: {}]
  %s8 = inlined_call_operand.vmem [shape: f32[1,8], index: 8, kind: input, shape index: {}]
  %s9 = inlined_call_operand.hbm [shape: f32[8,8], index: 9, kind: output, shape index: {}]
  %s10 = sld [smem:[#allocation0]]
  $region46: #{tpu_custom_call.1} parent=0
    _
  %s12 = ssub.s32 1, %s10
  %s13 = scalar_select 0, %s12, %s10
  $region1: #{tpu_custom_call.1} parent=0
    #allocation2 [shape = 'u8[4096]{0}', space=vmem, size = 0x1000, scoped, tag = 'output window, operand 0, single buffered']
    #allocation3 [shape = 's32[1]{0}', space=sflag, size = 0x4, scoped, tag = 'scoped memory for tpu_custom_call.1']
    %14 = vsyncpa [#allocation3], 0
    // Predicated region
    $region2: #{tpu_custom_call.1} parent=1 // pred_check
      _
    $region3: #{tpu_custom_call.1} parent=1 // pred_check_branch
      %16 = sbr.rel (0) target = $region5
    $region4: #{tpu_custom_call.1} parent=1 // pred_region
      _
    $region5: #{tpu_custom_call.1} parent=1 // pred_fallthru
      _
    // Predicated region
    $region6: #{tpu_custom_call.1} parent=1 // pred_check
      _
    $region7: #{tpu_custom_call.1} parent=1 // pred_check_branch
      %18 = sbr.rel (0) target = $region9
    $region8: #{tpu_custom_call.1} parent=1 // pred_region
      _
    $region9: #{tpu_custom_call.1} parent=1 // pred_fallthru
      _
    // Predicated region
    $region10: #{tpu_custom_call.1} parent=1 // pred_check
      _
    $region11: #{tpu_custom_call.1} parent=1 // pred_check_branch
      %20 = sbr.rel (0) target = $region13
    $region12: #{tpu_custom_call.1} parent=1 // pred_region
      _
    $region13: #{tpu_custom_call.1} parent=1 // pred_fallthru
      _
    // Predicated region
    $region14: #{tpu_custom_call.1} parent=1 // pred_check
      _
    $region15: #{tpu_custom_call.1} parent=1 // pred_check_branch
      %22 = sbr.rel (0) target = $region17
    $region16: #{tpu_custom_call.1} parent=1 // pred_region
      _
    $region17: #{tpu_custom_call.1} parent=1 // pred_fallthru
      _
    // Predicated region
    $region18: #{tpu_custom_call.1} parent=1 // pred_check
      _
    $region19: #{tpu_custom_call.1} parent=1 // pred_check_branch
      %24 = sbr.rel (0) target = $region21
    $region20: #{tpu_custom_call.1} parent=1 // pred_region
      _
    $region21: #{tpu_custom_call.1} parent=1 // pred_fallthru
      _
    // Predicated region
    $region22: #{tpu_custom_call.1} parent=1 // pred_check
      _
    $region23: #{tpu_custom_call.1} parent=1 // pred_check_branch
      %26 = sbr.rel (0) target = $region25
    $region24: #{tpu_custom_call.1} parent=1 // pred_region
      _
    $region25: #{tpu_custom_call.1} parent=1 // pred_fallthru
      _
    // Predicated region
    $region26: #{tpu_custom_call.1} parent=1 // pred_check
      _
    $region27: #{tpu_custom_call.1} parent=1 // pred_check_branch
      %28 = sbr.rel (0) target = $region29
    $region28: #{tpu_custom_call.1} parent=1 // pred_region
      _
    $region29: #{tpu_custom_call.1} parent=1 // pred_fallthru
      _
    // Predicated region
    $region30: #{tpu_custom_call.1} parent=1 // pred_check
      _
    $region31: #{tpu_custom_call.1} parent=1 // pred_check_branch
      %30 = sbr.rel (0) target = $region33
    $region32: #{tpu_custom_call.1} parent=1 // pred_region
      _
    $region33: #{tpu_custom_call.1} parent=1 // pred_fallthru
      _
    // Predicated region
    $region34: #{tpu_custom_call.1} parent=1 // pred_check
      _
    $region35: #{tpu_custom_call.1} parent=1 // pred_check_branch
      %32 = sbr.rel (0) target = $region37
    $region36: #{tpu_custom_call.1} parent=1 // pred_region
      _
    $region37: #{tpu_custom_call.1} parent=1 // pred_fallthru
      _
    %v33 = vld [vmem:[%s0] sm:$0xff]
    %v34 = vld [vmem:[%s2] sm:$0xf]
    %v35 = vld [vmem:[%s1] sm:$0xff]
    %v36 = vld [vmem:[%s3] sm:$0xf]
    %vm37 = vcmask 31744
    %v39 = vsel %vm37, %v35, 0
    %vm41 = vcmask 1043456
    %v43 = vsel %vm41, %v36, 0
    %45 = vmatprep.subr.mxu0 0.0
    %46 = vmatpush1.msra.mxu0 %v43
    %47 = vmatprep.subr.mxu0 0.0
    %48 = vmatpush1.msra.mxu0 0.0
    %49 = vmatprep.subr.mxu0 0.0
    %50 = vmatpush1.msra.mxu0 0.0
    %51 = vmatprep.subr.mxu0 0.0
    %52 = vmatpush1.msra.mxu0 0.0
    %53 = vmatprep.subr.mxu0 0.0
    %54 = vmatpush1.msra.mxu0 0.0
    %55 = vmatprep.subr.mxu0 0.0
    %56 = vmatpush1.msra.mxu0 0.0
    %57 = vmatprep.subr.mxu0 0.0
    %58 = vmatpush1.msra.mxu0 0.0
    %59 = vmatprep.subr.mxu0 0.0
    %60 = vmatpush1.msra.mxu0 0.0
    %61 = vmatprep.subr.mxu0 0.0
    %62 = vmatpush1.msra.mxu0 0.0
    %63 = vmatprep.subr.mxu0 0.0
    %64 = vmatpush1.msra.mxu0 0.0
    %65 = vmatprep.subr.mxu0 0.0
    %66 = vmatpush1.msra.mxu0 0.0
    %67 = vmatprep.subr.mxu0 0.0
    %68 = vmatpush1.msra.mxu0 0.0
    %69 = vmatprep.subr.mxu0 0.0
    %70 = vmatpush1.msra.mxu0 0.0
    %71 = vmatprep.subr.mxu0 0.0
    %72 = vmatpush1.msra.mxu0 0.0
    %73 = vmatprep.subr.mxu0 0.0
    %74 = vmatpush1.msra.mxu0 0.0
    %75 = vmatprep.subr.mxu0 0.0
    %76 = vmatpush1.msra.mxu0 0.0
    %77 = vmatprep.subr.mxu0 0.0
    %78 = vmatpush1.msra.mxu0 0.0
    %79 = vmatprep.subr.mxu0 0.0
    %80 = vmatpush1.msra.mxu0 0.0
    %81 = vmatprep.subr.mxu0 0.0
    %82 = vmatpush1.msra.mxu0 0.0
    %83 = vmatprep.subr.mxu0 0.0
    %84 = vmatpush1.msra.mxu0 0.0
    %85 = vmatprep.subr.mxu0 0.0
    %86 = vmatpush1.msra.mxu0 0.0
    %87 = vmatprep.subr.mxu0 0.0
    %88 = vmatpush1.msra.mxu0 0.0
    %89 = vmatprep.subr.mxu0 0.0
    %90 = vmatpush1.msra.mxu0 0.0
    %91 = vmatprep.subr.mxu0 0.0
    %92 = vmatpush1.msra.mxu0 0.0
    %93 = vmatprep.subr.mxu0 0.0
    %94 = vmatpush1.msra.mxu0 0.0
    %95 = vmatprep.subr.mxu0 0.0
    %96 = vmatpush1.msra.mxu0 0.0
    %97 = vmatprep.subr.mxu0 0.0
    %98 = vmatpush1.msra.mxu0 0.0
    %99 = vmatprep.subr.mxu0 0.0
    %100 = vmatpush1.msra.mxu0 0.0
    %101 = vmatprep.subr.mxu0 0.0
    %102 = vmatpush1.msra.mxu0 0.0
    %103 = vmatprep.subr.mxu0 0.0
    %104 = vmatpush1.msra.mxu0 0.0
    %105 = vmatprep.subr.mxu0 0.0
    %106 = vmatpush1.msra.mxu0 0.0
    %107 = vmatprep.subr.mxu0 0.0
    %108 = vmatpush1.msra.mxu0 0.0
    %109 = vmatprep.mubr.f32.mxu0 0.0
    %110 = vmatmul.mubr.f32.gmra.mrb[0].mxu0 %v39
    %v111 = vpop.f32.mrb[0].mxu0
    %v112 = vadd.f32 0.0, %v111
    %v113 = vpop.f32.mrb[0].mxu0
    %114 = vdwg.mxu0
    %v116 = vsel %vm37, %v33, 0
    %v119 = vsel %vm41, %v34, 0
    %121 = vmatprep.subr.mxu0 0.0
    %122 = vmatpush1.msra.mxu0 %v119
    %123 = vmatprep.subr.mxu0 0.0
    %124 = vmatpush1.msra.mxu0 0.0
    %125 = vmatprep.subr.mxu0 0.0
    %126 = vmatpush1.msra.mxu0 0.0
    %127 = vmatprep.subr.mxu0 0.0
    %128 = vmatpush1.msra.mxu0 0.0
    %129 = vmatprep.subr.mxu0 0.0
    %130 = vmatpush1.msra.mxu0 0.0
    %131 = vmatprep.subr.mxu0 0.0
    %132 = vmatpush1.msra.mxu0 0.0
    %133 = vmatprep.subr.mxu0 0.0
    %134 = vmatpush1.msra.mxu0 0.0
    %135 = vmatprep.subr.mxu0 0.0
    %136 = vmatpush1.msra.mxu0 0.0
    %137 = vmatprep.subr.mxu0 0.0
    %138 = vmatpush1.msra.mxu0 0.0
    %139 = vmatprep.subr.mxu0 0.0
    %140 = vmatpush1.msra.mxu0 0.0
    %141 = vmatprep.subr.mxu0 0.0
    %142 = vmatpush1.msra.mxu0 0.0
    %143 = vmatprep.subr.mxu0 0.0
    %144 = vmatpush1.msra.mxu0 0.0
    %145 = vmatprep.subr.mxu0 0.0
    %146 = vmatpush1.msra.mxu0 0.0
    %147 = vmatprep.subr.mxu0 0.0
    %148 = vmatpush1.msra.mxu0 0.0
    %149 = vmatprep.subr.mxu0 0.0
    %150 = vmatpush1.msra.mxu0 0.0
    %151 = vmatprep.subr.mxu0 0.0
    %152 = vmatpush1.msra.mxu0 0.0
    %153 = vmatprep.subr.mxu0 0.0
    %154 = vmatpush1.msra.mxu0 0.0
    %155 = vmatprep.subr.mxu0 0.0
    %156 = vmatpush1.msra.mxu0 0.0
    %157 = vmatprep.subr.mxu0 0.0
    %158 = vmatpush1.msra.mxu0 0.0
    %159 = vmatprep.subr.mxu0 0.0
    %160 = vmatpush1.msra.mxu0 0.0
    %161 = vmatprep.subr.mxu0 0.0
    %162 = vmatpush1.msra.mxu0 0.0
    %163 = vmatprep.subr.mxu0 0.0
    %164 = vmatpush1.msra.mxu0 0.0
    %165 = vmatprep.subr.mxu0 0.0
    %166 = vmatpush1.msra.mxu0 0.0
    %167 = vmatprep.subr.mxu0 0.0
    %168 = vmatpush1.msra.mxu0 0.0
    %169 = vmatprep.subr.mxu0 0.0
    %170 = vmatpush1.msra.mxu0 0.0
    %171 = vmatprep.subr.mxu0 0.0
    %172 = vmatpush1.msra.mxu0 0.0
    %173 = vmatprep.subr.mxu0 0.0
    %174 = vmatpush1.msra.mxu0 0.0
    %175 = vmatprep.subr.mxu0 0.0
    %176 = vmatpush1.msra.mxu0 0.0
    %177 = vmatprep.subr.mxu0 0.0
    %178 = vmatpush1.msra.mxu0 0.0
    %179 = vmatprep.subr.mxu0 0.0
    %180 = vmatpush1.msra.mxu0 0.0
    %181 = vmatprep.subr.mxu0 0.0
    %182 = vmatpush1.msra.mxu0 0.0
    %183 = vmatprep.subr.mxu0 0.0
    %184 = vmatpush1.msra.mxu0 0.0
    %185 = vmatprep.mubr.f32.mxu0 0.0
    %186 = vmatmul.mubr.f32.gmra.mrb[0].mxu0 %v116
    %v187 = vpop.f32.mrb[0].mxu0
    %v188 = vadd.f32 %v112, %v187
    %v189 = vpop.f32.mrb[0].mxu0
    %190 = vdwg.mxu0
    %v191 = vld [vmem:[%s4] sm:$0x1]
    %v193 = vlaneseq
    %v194 = vshrl.u32 %v193, 7
    %v195 = vsub.s32 0, %v194
    %v196 = vrot.slane %v191, %v195
    %v198 = vadd.f32 %v188, %v196
    %v199 = vmax.f32 %v198, 0.0
    %v200 = vld [vmem:[%s5] sm:$0xff]
    %v201 = vld [vmem:[%s5 + $0x8] sm:$0xff]
    %v202 = vld [vmem:[%s5 + $0x10] sm:$0xff]
    %v203 = vld [vmem:[%s5 + $0x18] sm:$0xff]
    %v204 = vld [vmem:[%s6] sm:$0x1]
    %v206 = vlaneseq
    %v207 = vshrl.u32 %v206, 7
    %v208 = vsub.s32 0, %v207
    %v209 = vrot.slane %v204, %v208
    %vm211 = vcmask 261120
    %v213 = vsel %vm211, %v199, 0
    %215 = vmatprep.subr.mxu0 0.0
    %216 = vmatpush1.msra.mxu0 %v200
    %217 = vmatprep.subr.mxu0 0.0
    %218 = vmatpush1.msra.mxu0 %v201
    %219 = vmatprep.subr.mxu0 0.0
    %220 = vmatpush1.msra.mxu0 %v202
    %221 = vmatprep.subr.mxu0 0.0
    %222 = vmatpush1.msra.mxu0 %v203
    %223 = vmatprep.subr.mxu0 0.0
    %224 = vmatpush1.msra.mxu0 0.0
    %225 = vmatprep.subr.mxu0 0.0
    %226 = vmatpush1.msra.mxu0 0.0
    %227 = vmatprep.subr.mxu0 0.0
    %228 = vmatpush1.msra.mxu0 0.0
    %229 = vmatprep.subr.mxu0 0.0
    %230 = vmatpush1.msra.mxu0 0.0
    %231 = vmatprep.subr.mxu0 0.0
    %232 = vmatpush1.msra.mxu0 0.0
    %233 = vmatprep.subr.mxu0 0.0
    %234 = vmatpush1.msra.mxu0 0.0
    %235 = vmatprep.subr.mxu0 0.0
    %236 = vmatpush1.msra.mxu0 0.0
    %237 = vmatprep.subr.mxu0 0.0
    %238 = vmatpush1.msra.mxu0 0.0
    %239 = vmatprep.subr.mxu0 0.0
    %240 = vmatpush1.msra.mxu0 0.0
    %241 = vmatprep.subr.mxu0 0.0
    %242 = vmatpush1.msra.mxu0 0.0
    %243 = vmatprep.subr.mxu0 0.0
    %244 = vmatpush1.msra.mxu0 0.0
    %245 = vmatprep.subr.mxu0 0.0
    %246 = vmatpush1.msra.mxu0 0.0
    %247 = vmatprep.subr.mxu0 0.0
    %248 = vmatpush1.msra.mxu0 0.0
    %249 = vmatprep.subr.mxu0 0.0
    %250 = vmatpush1.msra.mxu0 0.0
    %251 = vmatprep.subr.mxu0 0.0
    %252 = vmatpush1.msra.mxu0 0.0
    %253 = vmatprep.subr.mxu0 0.0
    %254 = vmatpush1.msra.mxu0 0.0
    %255 = vmatprep.subr.mxu0 0.0
    %256 = vmatpush1.msra.mxu0 0.0
    %257 = vmatprep.subr.mxu0 0.0
    %258 = vmatpush1.msra.mxu0 0.0
    %259 = vmatprep.subr.mxu0 0.0
    %260 = vmatpush1.msra.mxu0 0.0
    %261 = vmatprep.subr.mxu0 0.0
    %262 = vmatpush1.msra.mxu0 0.0
    %263 = vmatprep.subr.mxu0 0.0
    %264 = vmatpush1.msra.mxu0 0.0
    %265 = vmatprep.subr.mxu0 0.0
    %266 = vmatpush1.msra.mxu0 0.0
    %267 = vmatprep.subr.mxu0 0.0
    %268 = vmatpush1.msra.mxu0 0.0
    %269 = vmatprep.subr.mxu0 0.0
    %270 = vmatpush1.msra.mxu0 0.0
    %271 = vmatprep.subr.mxu0 0.0
    %272 = vmatpush1.msra.mxu0 0.0
    %273 = vmatprep.subr.mxu0 0.0
    %274 = vmatpush1.msra.mxu0 0.0
    %275 = vmatprep.subr.mxu0 0.0
    %276 = vmatpush1.msra.mxu0 0.0
    %277 = vmatprep.subr.mxu0 0.0
    %278 = vmatpush1.msra.mxu0 0.0
    %279 = vmatprep.mubr.f32.mxu0 0.0
    %280 = vmatmul.mubr.f32.gmra.mrb[0].mxu0 %v213
    %v281 = vpop.f32.mrb[0].mxu0
    %v282 = vadd.f32 %v209, %v281
    %v283 = vpop.f32.mrb[0].mxu0
    %284 = vdwg.mxu0
    %v285 = vmax.f32 %v282, 0.0
    %v286 = vld [vmem:[%s7] sm:$0xff]
    %v287 = vld [vmem:[%s7 + $0x8] sm:$0xff]
    %v288 = vld [vmem:[%s7 + $0x10] sm:$0xff]
    %v289 = vld [vmem:[%s7 + $0x18] sm:$0xff]
    %v290 = vld [vmem:[%s8] sm:$0x1]
    %v292 = vlaneseq
    %v293 = vshrl.u32 %v292, 7
    %v294 = vsub.s32 0, %v293
    %v295 = vrot.slane %v290, %v294
    %v298 = vsel %vm211, %v285, 0
    %300 = vmatprep.subr.mxu0 0.0
    %301 = vmatpush1.msra.mxu0 %v286
    %302 = vmatprep.subr.mxu0 0.0
    %303 = vmatpush1.msra.mxu0 %v287
    %304 = vmatprep.subr.mxu0 0.0
    %305 = vmatpush1.msra.mxu0 %v288
    %306 = vmatprep.subr.mxu0 0.0
    %307 = vmatpush1.msra.mxu0 %v289
    %308 = vmatprep.subr.mxu0 0.0
    %309 = vmatpush1.msra.mxu0 0.0
    %310 = vmatprep.subr.mxu0 0.0
    %311 = vmatpush1.msra.mxu0 0.0
    %312 = vmatprep.subr.mxu0 0.0
    %313 = vmatpush1.msra.mxu0 0.0
    %314 = vmatprep.subr.mxu0 0.0
    %315 = vmatpush1.msra.mxu0 0.0
    %316 = vmatprep.subr.mxu0 0.0
    %317 = vmatpush1.msra.mxu0 0.0
    %318 = vmatprep.subr.mxu0 0.0
    %319 = vmatpush1.msra.mxu0 0.0
    %320 = vmatprep.subr.mxu0 0.0
    %321 = vmatpush1.msra.mxu0 0.0
    %322 = vmatprep.subr.mxu0 0.0
    %323 = vmatpush1.msra.mxu0 0.0
    %324 = vmatprep.subr.mxu0 0.0
    %325 = vmatpush1.msra.mxu0 0.0
    %326 = vmatprep.subr.mxu0 0.0
    %327 = vmatpush1.msra.mxu0 0.0
    %328 = vmatprep.subr.mxu0 0.0
    %329 = vmatpush1.msra.mxu0 0.0
    %330 = vmatprep.subr.mxu0 0.0
    %331 = vmatpush1.msra.mxu0 0.0
    %332 = vmatprep.subr.mxu0 0.0
    %333 = vmatpush1.msra.mxu0 0.0
    %334 = vmatprep.subr.mxu0 0.0
    %335 = vmatpush1.msra.mxu0 0.0
    %336 = vmatprep.subr.mxu0 0.0
    %337 = vmatpush1.msra.mxu0 0.0
    %338 = vmatprep.subr.mxu0 0.0
    %339 = vmatpush1.msra.mxu0 0.0
    %340 = vmatprep.subr.mxu0 0.0
    %341 = vmatpush1.msra.mxu0 0.0
    %342 = vmatprep.subr.mxu0 0.0
    %343 = vmatpush1.msra.mxu0 0.0
    %344 = vmatprep.subr.mxu0 0.0
    %345 = vmatpush1.msra.mxu0 0.0
    %346 = vmatprep.subr.mxu0 0.0
    %347 = vmatpush1.msra.mxu0 0.0
    %348 = vmatprep.subr.mxu0 0.0
    %349 = vmatpush1.msra.mxu0 0.0
    %350 = vmatprep.subr.mxu0 0.0
    %351 = vmatpush1.msra.mxu0 0.0
    %352 = vmatprep.subr.mxu0 0.0
    %353 = vmatpush1.msra.mxu0 0.0
    %354 = vmatprep.subr.mxu0 0.0
    %355 = vmatpush1.msra.mxu0 0.0
    %356 = vmatprep.subr.mxu0 0.0
    %357 = vmatpush1.msra.mxu0 0.0
    %358 = vmatprep.subr.mxu0 0.0
    %359 = vmatpush1.msra.mxu0 0.0
    %360 = vmatprep.subr.mxu0 0.0
    %361 = vmatpush1.msra.mxu0 0.0
    %362 = vmatprep.subr.mxu0 0.0
    %363 = vmatpush1.msra.mxu0 0.0
    %364 = vmatprep.mubr.f32.mxu0 0.0
    %365 = vmatmul.mubr.f32.gmra.mrb[0].mxu0 %v298
    %v366 = vpop.f32.mrb[0].mxu0
    %v367 = vadd.f32 %v295, %v366
    %v368 = vpop.f32.mrb[0].mxu0
    %369 = vdwg.mxu0
    %vm370 = vcmask 64512
    %v371 = vsel %vm370, %v367, -inf
    %372 = vmax.xlane.f32.xlu0 %v371
    %v373 = vpop.xlane.xlu0 %372
    %v374 = vsub.f32 %v367, %v373
    %v375 = vmul.f32 %v374, 1.442695
    %v376 = vpow.pop %v375
    %v377 = vsel %vm370, %v376, 0.0
    %378 = vadd.xlane.f32.xlu0 %v377
    %v379 = vpop.xlane.xlu0 %378
    %v380 = vrcp.pop %v379
    %v381 = vmul.f32 %v376, %v380
    %382 = vst.msk [vmem:[#allocation2] sm:$0xff] %vm370, %v381
    // Predicated region
    $region38: #{tpu_custom_call.1} parent=1 // pred_check
      _
    $region39: #{tpu_custom_call.1} parent=1 // pred_check_branch
      %384 = sbr.rel (0) target = $region41
    $region40: #{tpu_custom_call.1} parent=1 // pred_region
      %s386 = ssub.s32 128, 128
      %387 = vsyncadd [#allocation3], %s386
      %s389 = sshll.u32 [#allocation2], 4
      %s390 = int_to_ptr.vmem [resolvable:$true] %s389
      %392 = dma.vmem_to_hbm [thread:$0]  %s390, 128, %s9, [#allocation3]
    $region41: #{tpu_custom_call.1} parent=1 // pred_fallthru
      _
    // Predicated region
    $region42: #{tpu_custom_call.1} parent=1 // pred_check
      _
    $region43: #{tpu_custom_call.1} parent=1 // pred_check_branch
      %394 = sbr.rel (0) target = $region45
    $region44: #{tpu_custom_call.1} parent=1 // pred_region
      %395 = dma.done [#allocation3], 128
    $region45: #{tpu_custom_call.1} parent=1 // pred_fallthru
      _
    %396 = vsyncpa [#allocation3], 1

</llo_original>
